<compile_context>
chip_gen: v5e
topology: v5e:2x2
jax: 0.10.0
libtpu: 0.0.40
codegen_flags: <defaults>
</compile_context>

<pallas_src>
import jax
import jax.numpy as jnp
from jax.experimental import pallas as pl
from jax.experimental.pallas import tpu as pltpu


def _focus_conv_bn_silu_kernel(x_ref, w_ref, shift_ref, o_ref):
    # x_ref:     (1, 4C, TS)   bf16  space-to-depth channels, spatial on lanes
    # w_ref:     (Cout, 4C)    bf16  BN-scale-folded 1x1 conv weight
    # shift_ref: (Cout, 1)     f32   folded BN shift = beta - mean * gamma / sqrt(var + eps)
    # o_ref:     (1, Cout, TS) f32
    acc = jnp.dot(w_ref[...], x_ref[0], preferred_element_type=jnp.float32)   # MXU, K = 4C
    y = acc + shift_ref[...]                                                  # folded BN
    # SiLU: y * sigmoid(y) = y / (1 + exp(-y)); exp + approx-reciprocal -> EUP, mul -> VPU
    o_ref[0] = (y * pl.reciprocal(1.0 + jnp.exp(-y), approx=True)).astype(o_ref.dtype)


def _round_up(a, m):
    return -(-a // m) * m


def focus_forward(x, conv_w, bn_gamma, bn_beta, bn_mean, bn_var, eps=1e-5):
    """Focus.forward for ksize=1, stride=1 (inference BatchNorm semantics).

    x:       (B, C, H, W)  float32, NCHW (H, W even)
    conv_w:  (Cout, 4*C, 1, 1)
    bn_*:    (Cout,)
    returns: (B, Cout, H//2, W//2) NCHW, float32
    """
    B, C, H, W = x.shape
    Cout = conv_w.shape[0]
    H2, W2 = H // 2, W // 2
    S = H2 * W2
    C4 = 4 * C

    # ---- space-to-depth phases, merged into one (B, 4C, S) bf16 operand ----------------
    # (concat order matches torch.cat((tl, bl, tr, br), dim=1) in the reference module)
    tl = x[:, :, 0::2, 0::2].reshape(B, C, S)
    bl = x[:, :, 1::2, 0::2].reshape(B, C, S)
    tr = x[:, :, 0::2, 1::2].reshape(B, C, S)
    br = x[:, :, 1::2, 1::2].reshape(B, C, S)
    xc = jnp.concatenate([tl, bl, tr, br], axis=1).astype(jnp.bfloat16)       # (B, 4C, S)

    # ---- fold BatchNorm into the weight (scale) and a per-channel shift ----------------
    scale = bn_gamma / jnp.sqrt(bn_var + eps)                                 # (Cout,)
    shift = (bn_beta - bn_mean * scale).reshape(Cout, 1).astype(jnp.float32)  # (Cout, 1)
    w2d = (conv_w.reshape(Cout, C4) * scale[:, None]).astype(jnp.bfloat16)    # (Cout, 4C)

    # ---- spatial tiling: lane-dense tiles, VMEM-budgeted, minimal padding --------------
    LANE = 128
    in_bpl = _round_up(C4, 16) * 2            # bf16 activation tile bytes / lane (16-sublane tiles)
    out_bpl = _round_up(Cout, 8) * 4          # f32 output tile bytes / lane (8-sublane tiles)
    per_lane = 2 * (in_bpl + out_bpl)         # double-buffered input + output
    vmem_budget = 24 * 1024 * 1024            # headroom under v7x scoped-VMEM default (32 MiB)
    ts_cap = max(LANE, min(16384, (vmem_budget // per_lane) // LANE * LANE))

    n_tiles = pl.cdiv(S, ts_cap)
    if B == 1 and n_tiles == 1 and S >= 1024:
        n_tiles = 2                           # v7x: keep both TensorCores busy when B == 1
    TS = pl.cdiv(S, n_tiles * LANE) * LANE    # multiple of 128, minimal last-tile padding
    S_pad = n_tiles * TS

    if S_pad != S:
        xc = jnp.pad(xc, ((0, 0), (0, 0), (0, S_pad - S)))

    grid = (B, n_tiles)
    out3d = pl.pallas_call(
        _focus_conv_bn_silu_kernel,
        out_shape=jax.ShapeDtypeStruct((B, Cout, S_pad), jnp.float32),
        grid=grid,
        in_specs=[
            pl.BlockSpec((1, C4, TS), lambda b, s: (b, 0, s)),    # activation tile (bf16)
            pl.BlockSpec((Cout, C4), lambda b, s: (0, 0)),        # folded weight (resident)
            pl.BlockSpec((Cout, 1), lambda b, s: (0, 0)),         # folded shift (resident)
        ],
        out_specs=pl.BlockSpec((1, Cout, TS), lambda b, s: (b, 0, s)),
        compiler_params=pltpu.CompilerParams(
            dimension_semantics=("parallel", "parallel"),
            vmem_limit_bytes=32 * 1024 * 1024,
            allow_input_fusion=[True, False, False],   # let XLA fuse slice/concat/cast into the DMA
        ),
    )(xc, w2d, shift)

    if S_pad != S:
        out3d = out3d[:, :, :S]
    return out3d.reshape(B, Cout, H2, W2)


if __name__ == "__main__":
    # Focus(in_channels=4, out_channels=16, ksize=1, stride=1, act='silu')
    B, Cin, H, W = 2, 4, 16, 16
    Cout = 16

    key = jax.random.PRNGKey(0)
    kx, kw, kg, kb, km, kv = jax.random.split(key, 6)

    x = jax.random.normal(kx, (B, Cin, H, W), dtype=jnp.float32)

    # deterministic synthetic parameters (shapes from the module's __init__)
    conv_w = 0.1 * jax.random.normal(kw, (Cout, 4 * Cin, 1, 1), dtype=jnp.float32)
    bn_gamma = 1.0 + 0.01 * jax.random.normal(kg, (Cout,), dtype=jnp.float32)
    bn_beta = 0.01 * jax.random.normal(kb, (Cout,), dtype=jnp.float32)
    bn_mean = 0.01 * jax.random.normal(km, (Cout,), dtype=jnp.float32)
    bn_var = 1.0 + 0.1 * jnp.abs(jax.random.normal(kv, (Cout,), dtype=jnp.float32))

    focus = jax.jit(focus_forward)
    out = focus(x, conv_w, bn_gamma, bn_beta, bn_mean, bn_var)
    out = jax.block_until_ready(out)

    assert out.shape == (B, Cout, H // 2, W // 2), out.shape

    # correctness check against a pure-JAX f32 reference (conv -> BN(eval) -> SiLU)
    def ref(x):
        tl_ = x[..., ::2, ::2]; tr_ = x[..., ::2, 1::2]
        bl_ = x[..., 1::2, ::2]; br_ = x[..., 1::2, 1::2]
        xcat = jnp.concatenate((tl_, bl_, tr_, br_), axis=1)
        y = jax.lax.conv_general_dilated(
            xcat, conv_w, window_strides=(1, 1), padding="VALID",
            dimension_numbers=("NCHW", "OIHW", "NCHW"))
        s = bn_gamma / jnp.sqrt(bn_var + 1e-5)
        y = y * s[None, :, None, None] + (bn_beta - bn_mean * s)[None, :, None, None]
        return y * jax.nn.sigmoid(y)

    ref_out = ref(x)
    # bf16-streamed activations/weights (f32 accumulation) -> relaxed tolerance vs f32 reference
    assert jnp.allclose(out, ref_out, atol=2e-2, rtol=2e-2), float(
        jnp.max(jnp.abs(out - ref_out)))

    print("KERNEL_OK")
</pallas_src>

<mosaic_0001>
module attributes {stable_mosaic.version = 11 : i64} {
  func.func @_focus_conv_bn_silu_kernel(%arg0: i32, %arg1: i32, %arg2: memref<1x16x128xbf16, #tpu.memory_space<vmem>>, %arg3: memref<16x16xbf16, #tpu.memory_space<vmem>>, %arg4: memref<16x1xf32, #tpu.memory_space<vmem>>, %arg5: memref<1x16x128xf32, #tpu.memory_space<vmem>>) attributes {dimension_semantics = [#tpu.dimension_semantics<parallel>, #tpu.dimension_semantics<parallel>], iteration_bounds = array<i64: 2, 1>, scalar_prefetch = 0 : i64, scratch_operands = 0 : i64, tpu.core_type = #tpu.core_type<tc>, window_params = [{transform_indices = @transform_0, window_bounds = array<i64: 1, 16, 128>}, {pipeline_mode = #tpu.pipeline_mode<synchronous>, transform_indices = @transform_1, window_bounds = array<i64: 16, 16>}, {pipeline_mode = #tpu.pipeline_mode<synchronous>, transform_indices = @transform_2, window_bounds = array<i64: 16, 1>}, {transform_indices = @transform_3, window_bounds = array<i64: 1, 16, 128>}]} {
    %c0 = arith.constant 0 : index
    %c0_0 = arith.constant 0 : index
    %0 = vector.load %arg3[%c0, %c0_0] : memref<16x16xbf16, #tpu.memory_space<vmem>>, vector<16x16xbf16>
    %c0_1 = arith.constant 0 : index
    %c0_2 = arith.constant 0 : index
    %c0_3 = arith.constant 0 : index
    %1 = vector.load %arg2[%c0_1, %c0_2, %c0_3] : memref<1x16x128xbf16, #tpu.memory_space<vmem>>, vector<1x16x128xbf16>
    %2 = vector.shape_cast %1 : vector<1x16x128xbf16> to vector<16x128xbf16>
    %cst = arith.constant dense<0.000000e+00> : vector<16x128xf32>
    %3 = tpu.matmul %0, %2, %cst {dimension_numbers = #tpu.dot_dimension_numbers<[1], [0], [0], [1], [0, 0, 1, 1], [], []>} : vector<16x16xbf16>, vector<16x128xbf16>, vector<16x128xf32> -> vector<16x128xf32>
    %c0_4 = arith.constant 0 : index
    %c0_5 = arith.constant 0 : index
    %4 = vector.load %arg4[%c0_4, %c0_5] : memref<16x1xf32, #tpu.memory_space<vmem>>, vector<16x1xf32>
    %5 = vector.broadcast %4 : vector<16x1xf32> to vector<16x128xf32>
    %6 = arith.addf %3, %5 : vector<16x128xf32>
    %cst_6 = arith.constant 0.000000e+00 : f32
    %7 = vector.broadcast %cst_6 : f32 to vector<16x128xf32>
    %8 = arith.subf %7, %6 : vector<16x128xf32>
    %9 = math.exp %8 : vector<16x128xf32>
    %cst_7 = arith.constant 1.000000e+00 : f32
    %10 = vector.broadcast %cst_7 : f32 to vector<16x128xf32>
    %11 = arith.addf %10, %9 : vector<16x128xf32>
    %12 = tpu.reciprocal %11 {approx = true} : vector<16x128xf32> -> vector<16x128xf32>
    %13 = arith.mulf %6, %12 : vector<16x128xf32>
    %c0_8 = arith.constant 0 : index
    %c0_9 = arith.constant 0 : index
    %c0_10 = arith.constant 0 : index
    %14 = vector.load %arg5[%c0_8, %c0_9, %c0_10] : memref<1x16x128xf32, #tpu.memory_space<vmem>>, vector<1x16x128xf32>
    %15 = vector.shape_cast %14 : vector<1x16x128xf32> to vector<16x128xf32>
    %16 = vector.shape_cast %13 : vector<16x128xf32> to vector<1x16x128xf32>
    tpu.vector_store %arg5[%c0_8, %c0_9, %c0_10], %16 {strides = array<i32>} : memref<1x16x128xf32, #tpu.memory_space<vmem>>, vector<1x16x128xf32>,
    return
  }
  func.func @transform_0(%arg0: i32, %arg1: i32) -> (i32, i32, i32) {
    %c0_i32 = arith.constant 0 : i32
    %c0_i32_0 = arith.constant 0 : i32
    return %arg0, %c0_i32, %arg1 : i32, i32, i32
  }
  func.func @transform_1(%arg0: i32, %arg1: i32) -> (i32, i32) {
    %c0_i32 = arith.constant 0 : i32
    %c0_i32_0 = arith.constant 0 : i32
    %c0_i32_1 = arith.constant 0 : i32
    return %c0_i32, %c0_i32_0 : i32, i32
  }
  func.func @transform_2(%arg0: i32, %arg1: i32) -> (i32, i32) {
    %c0_i32 = arith.constant 0 : i32
    %c0_i32_0 = arith.constant 0 : i32
    %c0_i32_1 = arith.constant 0 : i32
    return %c0_i32, %c0_i32_0 : i32, i32
  }
  func.func @transform_3(%arg0: i32, %arg1: i32) -> (i32, i32, i32) {
    %c0_i32 = arith.constant 0 : i32
    %c0_i32_0 = arith.constant 0 : i32
    return %arg0, %c0_i32, %arg1 : i32, i32, i32
  }
}

</mosaic_0001>

<llo_original>
// kernel: focus_forward.2
$region0: #{focus_forward.2}
  #allocation0 [shape = 'u32[]', space=smem, size = 0x4, offset = 0x4, fixed_abs, tag = 'smem constant byte address 0x4 - core index']
  #allocation1 [shape = 'u32[72,128]{1,0:T(1,128)}', space=vmem, size = 0x9000, scoped, tag = 'internal scratch']
  #allocation2 [shape = 'u32[2048]{0}', space=vmem, size = 0x2000, scoped, tag = 'scoped memory for focus_forward.2']
  #allocation3 [shape = 'u32[2048]{0}', space=vmem, size = 0x2000, scoped, tag = 'scoped memory for focus_forward.2']
  #allocation4 [shape = 'u32[2048]{0}', space=vmem, size = 0x2000, scoped, tag = 'scoped memory for focus_forward.2']
  #allocation5 [shape = 'u32[2048]{0}', space=vmem, size = 0x2000, scoped, tag = 'scoped memory for focus_forward.2']
  #allocation6 [shape = 'u32[2048]{0}', space=vmem, size = 0x2000, scoped, tag = 'scoped memory for focus_forward.2']
  #allocation7 [shape = 'u32[2048]{0}', space=vmem, size = 0x2000, scoped, tag = 'scoped memory for focus_forward.2']
  #allocation8 [shape = 'u32[2048]{0}', space=vmem, size = 0x2000, scoped, tag = 'scoped memory for focus_forward.2']
  #allocation9 [shape = 'u32[2048]{0}', space=vmem, size = 0x2000, scoped, tag = 'scoped memory for focus_forward.2']
  #allocation10 [shape = 'u32[2048]{0}', space=vmem, size = 0x2000, scoped, tag = 'scoped memory for focus_forward.2']
  #allocation11 [shape = 'u32[2048]{0}', space=vmem, size = 0x2000, scoped, tag = 'scoped memory for focus_forward.2']
  #allocation12 [shape = 'u32[2048]{0}', space=vmem, size = 0x2000, scoped, tag = 'scoped memory for focus_forward.2']
  #allocation13 [shape = 'u32[2048]{0}', space=vmem, size = 0x2000, scoped, tag = 'scoped memory for focus_forward.2']
  #allocation14 [shape = 'u32[2048]{0}', space=vmem, size = 0x2000, scoped, tag = 'scoped memory for focus_forward.2']
  #allocation15 [shape = 'u32[2048]{0}', space=vmem, size = 0x2000, scoped, tag = 'scoped memory for focus_forward.2']
  #allocation16 [shape = 'u32[2048]{0}', space=vmem, size = 0x2000, scoped, tag = 'scoped memory for focus_forward.2']
  #allocation17 [shape = 'u32[2048]{0}', space=vmem, size = 0x2000, scoped, tag = 'scoped memory for focus_forward.2']
  #allocation18 [shape = 'u32[2048]{0}', space=vmem, size = 0x2000, scoped, tag = 'scoped memory for focus_forward.2']
  #allocation19 [shape = 'u32[2048]{0}', space=vmem, size = 0x2000, scoped, tag = 'scoped memory for focus_forward.2']
  #allocation20 [shape = 'u32[2048]{0}', space=vmem, size = 0x2000, scoped, tag = 'scoped memory for focus_forward.2']
  #allocation21 [shape = 'u32[2048]{0}', space=vmem, size = 0x2000, scoped, tag = 'scoped memory for focus_forward.2']
  %s0 = inlined_call_operand.vmem [shape: bf16[16,16], index: 0, kind: input, shape index: {}]
  %s1 = inlined_call_operand.vmem [shape: f32[16,1], index: 1, kind: input, shape index: {}]
  %s2 = inlined_call_operand.vmem [shape: bf16[2,4,64], index: 2, kind: input, shape index: {}]
  %s3 = inlined_call_operand.<no memory space> [shape: bf16[], index: 3, kind: input, shape index: {}]
  %s4 = inlined_call_operand.vmem [shape: bf16[2,4,64], index: 4, kind: input, shape index: {}]
  %s5 = inlined_call_operand.vmem [shape: bf16[2,4,64], index: 5, kind: input, shape index: {}]
  %s6 = inlined_call_operand.<no memory space> [shape: s32[], index: 6, kind: input, shape index: {}]
  %s7 = inlined_call_operand.vmem [shape: bf16[2,4,64], index: 7, kind: input, shape index: {}]
  %s8 = inlined_call_operand.<no memory space> [shape: bf16[], index: 8, kind: input, shape index: {}]
  %s9 = inlined_call_operand.vmem [shape: f32[2,16,128], index: 9, kind: output, shape index: {}]
  %s10 = sld [smem:[#allocation0]]
  $region57: #{focus_forward.2} parent=0
    _
  %s12 = ssub.s32 1, %s10
  %s13 = scalar_select 0, %s12, %s10
  %v14 = vstv %s3
  %v15 = vunpack.i.l.bf16 %v14
  %v17 = vunpack.i.h.bf16 %v14
  %v19 = vstv %s3
  %v20 = vunpack.i.l.bf16 %v19
  %v22 = vunpack.i.h.bf16 %v19
  %v24 = vstv %s3
  %v25 = vunpack.i.l.bf16 %v24
  %v27 = vunpack.i.h.bf16 %v24
  %v29 = vstv %s6
  %v30 = vstv %s3
  %v31 = vunpack.i.l.bf16 %v30
  %v33 = vunpack.i.h.bf16 %v30
  %v35 = vstv %s8
  %v36 = vunpack.i.l.bf16 %v35
  %v38 = vunpack.i.h.bf16 %v35
  loop: start=0, step=1, limit=4
  $region2: #{focus_forward.2} parent=0 // loop_pre_header
    _
  $region3: #{focus_forward.2} parent=0 // loop_header
    %s41 = sphi 0, %s45
    %p42 = scmp.ge.s32.totalorder %s41, 4
    %s48 = sphi 0, %s60
    %s49 = sphi 0, %s56
    %s50 = sphi 0, %s48
    %s51 = sphi 0, %s49
    %s52 = sphi 0, %s50
    %s53 = sphi 0, %s51
    %s69 = sphi 0, %s71
    %s72 = sphi 0, %s69
    %s73 = sphi 0, %s72
    %s89 = sphi 0, %s73
    %s101 = sphi 0, %s103
    %s104 = sphi 0, %s101
    %s105 = sphi 0, %s104
    %s121 = sphi 0, %s105
    %s133 = sphi 0, %s135
    %s136 = sphi 0, %s133
    %s137 = sphi 0, %s136
    %s153 = sphi 0, %s137
    %s161 = sphi 0, %s163
    %s164 = sphi 0, %s161
    %s165 = sphi 0, %s164
    %s181 = sphi 0, %s165
    %s185 = sphi 0, %s185
    %s187 = sphi 0, %s185
    %s188 = sphi 0, %s187
    %s202 = sphi 0, %s188
    %s206 = sphi 0, %s206
    %s208 = sphi 0, %s206
    %s209 = sphi 0, %s208
    %s223 = sphi 0, %s209
    %s231 = sphi 0, %s233
    %s234 = sphi 0, %s231
    %s235 = sphi 0, %s234
    %s251 = sphi 0, %s235
  $region4: #{focus_forward.2} parent=0 // loop_header_branch
    %44 = sbr.rel (%p42) target = $region8
  $region5: #{focus_forward.2} parent=0 // loop_body
    %s46 = ssub.s32 %s41, 1
    %s47 = ssub.s32 %s41, 2
    %s54 = sadd.s32 1, %s49
    %p55 = scmp.ge.s32.totalorder %s54, 1
    %s56 = scalar_select %p55, 0, %s54
    %s57 = sadd.s32 1, %s48
    %s58 = scalar_select %p55, %s57, %s48
    %p59 = scmp.ge.s32.totalorder %s58, 2
    %s60 = scalar_select %p59, 0, %s58
    %s63 = ssub.s32 %s48, %s60
    %s64 = ssub.s32 0, 0
    %s65 = sor.u32 %s63, %s64
    %s66 = ssub.s32 %s49, %s56
    %s67 = sor.u32 %s65, %s66
    %p68 = scmp.eq.s32.totalorder %s67, 0
    %s70 = sadd.s32 %s69, 1
    %s71 = scalar_select %p68, %s69, %s70
    %p74 = pneg %p68
    %p75 = scmp.eq.s32.totalorder %s41, 1
    %p76 = por %p74, %p75
    %p77 = scmp.ne.s32.totalorder %s69, %s72
    %p78 = scmp.eq.s32.totalorder %s41, 0
    %p79 = por %p77, %p78
    %p80 = scmp.ne.s32.totalorder %s69, %s72
    %p81 = scmp.eq.s32.totalorder %s46, 1
    %p82 = por %p80, %p81
    %p83 = scmp.ne.s32.totalorder %s72, %s73
    %p84 = scmp.eq.s32.totalorder %s46, 0
    %p85 = por %p83, %p84
    %p86 = scmp.ne.s32.totalorder %s72, %s73
    %p87 = scmp.eq.s32.totalorder %s47, 1
    %p88 = por %p86, %p87
    %p90 = scmp.ne.s32.totalorder %s73, %s89
    %p91 = scmp.eq.s32.totalorder %s47, 0
    %p92 = por %p90, %p91
    %s95 = ssub.s32 %s48, %s60
    %s96 = ssub.s32 0, 0
    %s97 = sor.u32 %s95, %s96
    %s98 = ssub.s32 %s49, %s56
    %s99 = sor.u32 %s97, %s98
    %p100 = scmp.eq.s32.totalorder %s99, 0
    %s102 = sadd.s32 %s101, 1
    %s103 = scalar_select %p100, %s101, %s102
    %p106 = pneg %p100
    %p107 = scmp.eq.s32.totalorder %s41, 1
    %p108 = por %p106, %p107
    %p109 = scmp.ne.s32.totalorder %s101, %s104
    %p110 = scmp.eq.s32.totalorder %s41, 0
    %p111 = por %p109, %p110
    %p112 = scmp.ne.s32.totalorder %s101, %s104
    %p113 = scmp.eq.s32.totalorder %s46, 1
    %p114 = por %p112, %p113
    %p115 = scmp.ne.s32.totalorder %s104, %s105
    %p116 = scmp.eq.s32.totalorder %s46, 0
    %p117 = por %p115, %p116
    %p118 = scmp.ne.s32.totalorder %s104, %s105
    %p119 = scmp.eq.s32.totalorder %s47, 1
    %p120 = por %p118, %p119
    %p122 = scmp.ne.s32.totalorder %s105, %s121
    %p123 = scmp.eq.s32.totalorder %s47, 0
    %p124 = por %p122, %p123
    %s127 = ssub.s32 %s48, %s60
    %s128 = ssub.s32 0, 0
    %s129 = sor.u32 %s127, %s128
    %s130 = ssub.s32 %s49, %s56
    %s131 = sor.u32 %s129, %s130
    %p132 = scmp.eq.s32.totalorder %s131, 0
    %s134 = sadd.s32 %s133, 1
    %s135 = scalar_select %p132, %s133, %s134
    %p138 = pneg %p132
    %p139 = scmp.eq.s32.totalorder %s41, 1
    %p140 = por %p138, %p139
    %p141 = scmp.ne.s32.totalorder %s133, %s136
    %p142 = scmp.eq.s32.totalorder %s41, 0
    %p143 = por %p141, %p142
    %p144 = scmp.ne.s32.totalorder %s133, %s136
    %p145 = scmp.eq.s32.totalorder %s46, 1
    %p146 = por %p144, %p145
    %p147 = scmp.ne.s32.totalorder %s136, %s137
    %p148 = scmp.eq.s32.totalorder %s46, 0
    %p149 = por %p147, %p148
    %p150 = scmp.ne.s32.totalorder %s136, %s137
    %p151 = scmp.eq.s32.totalorder %s47, 1
    %p152 = por %p150, %p151
    %p154 = scmp.ne.s32.totalorder %s137, %s153
    %p155 = scmp.eq.s32.totalorder %s47, 0
    %p156 = por %p154, %p155
    %s157 = ssub.s32 %s48, %s60
    %s158 = ssub.s32 %s49, %s56
    %s159 = sor.u32 %s157, %s158
    %p160 = scmp.eq.s32.totalorder %s159, 0
    %s162 = sadd.s32 %s161, 1
    %s163 = scalar_select %p160, %s161, %s162
    %p166 = pneg %p160
    %p167 = scmp.eq.s32.totalorder %s41, 1
    %p168 = por %p166, %p167
    %p169 = scmp.ne.s32.totalorder %s161, %s164
    %p170 = scmp.eq.s32.totalorder %s41, 0
    %p171 = por %p169, %p170
    %p172 = scmp.ne.s32.totalorder %s161, %s164
    %p173 = scmp.eq.s32.totalorder %s46, 1
    %p174 = por %p172, %p173
    %p175 = scmp.ne.s32.totalorder %s164, %s165
    %p176 = scmp.eq.s32.totalorder %s46, 0
    %p177 = por %p175, %p176
    %p178 = scmp.ne.s32.totalorder %s164, %s165
    %p179 = scmp.eq.s32.totalorder %s47, 1
    %p180 = por %p178, %p179
    %p182 = scmp.ne.s32.totalorder %s165, %s181
    %p183 = scmp.eq.s32.totalorder %s47, 0
    %p184 = por %p182, %p183
    %s186 = sadd.s32 %s185, 1
    %p189 = scmp.eq.s32.totalorder %s41, 1
    %p190 = scmp.ne.s32.totalorder %s185, %s187
    %p191 = scmp.eq.s32.totalorder %s41, 0
    %p192 = por %p190, %p191
    %p193 = scmp.ne.s32.totalorder %s185, %s187
    %p194 = scmp.eq.s32.totalorder %s46, 1
    %p195 = por %p193, %p194
    %p196 = scmp.ne.s32.totalorder %s187, %s188
    %p197 = scmp.eq.s32.totalorder %s46, 0
    %p198 = por %p196, %p197
    %p199 = scmp.ne.s32.totalorder %s187, %s188
    %p200 = scmp.eq.s32.totalorder %s47, 1
    %p201 = por %p199, %p200
    %p203 = scmp.ne.s32.totalorder %s188, %s202
    %p204 = scmp.eq.s32.totalorder %s47, 0
    %p205 = por %p203, %p204
    %s207 = sadd.s32 %s206, 1
    %p210 = scmp.eq.s32.totalorder %s41, 1
    %p211 = scmp.ne.s32.totalorder %s206, %s208
    %p212 = scmp.eq.s32.totalorder %s41, 0
    %p213 = por %p211, %p212
    %p214 = scmp.ne.s32.totalorder %s206, %s208
    %p215 = scmp.eq.s32.totalorder %s46, 1
    %p216 = por %p214, %p215
    %p217 = scmp.ne.s32.totalorder %s208, %s209
    %p218 = scmp.eq.s32.totalorder %s46, 0
    %p219 = por %p217, %p218
    %p220 = scmp.ne.s32.totalorder %s208, %s209
    %p221 = scmp.eq.s32.totalorder %s47, 1
    %p222 = por %p220, %p221
    %p224 = scmp.ne.s32.totalorder %s209, %s223
    %p225 = scmp.eq.s32.totalorder %s47, 0
    %p226 = por %p224, %p225
    %s227 = ssub.s32 %s48, %s60
    %s228 = ssub.s32 %s49, %s56
    %s229 = sor.u32 %s227, %s228
    %p230 = scmp.eq.s32.totalorder %s229, 0
    %s232 = sadd.s32 %s231, 1
    %s233 = scalar_select %p230, %s231, %s232
    %p236 = pneg %p230
    %p237 = scmp.eq.s32.totalorder %s41, 1
    %p238 = por %p236, %p237
    %p239 = scmp.ne.s32.totalorder %s231, %s234
    %p240 = scmp.eq.s32.totalorder %s41, 0
    %p241 = por %p239, %p240
    %p242 = scmp.ne.s32.totalorder %s231, %s234
    %p243 = scmp.eq.s32.totalorder %s46, 1
    %p244 = por %p242, %p243
    %p245 = scmp.ne.s32.totalorder %s234, %s235
    %p246 = scmp.eq.s32.totalorder %s46, 0
    %p247 = por %p245, %p246
    %p248 = scmp.ne.s32.totalorder %s234, %s235
    %p249 = scmp.eq.s32.totalorder %s47, 1
    %p250 = por %p248, %p249
    %p252 = scmp.ne.s32.totalorder %s235, %s251
    %p253 = scmp.eq.s32.totalorder %s47, 0
    %p254 = por %p252, %p253
    %p255 = scmp.le.s32.totalorder 1, %s41
    %p256 = scmp.lt.s32.totalorder %s41, 3
    %p257 = pnand %p255, %p256
    %p258 = pneg %p257
    // Predicated region
    $region9: #{focus_forward.2} parent=5 // pred_check
      _
    $region10: #{focus_forward.2} parent=5 // pred_check_branch
      %260 = sbr.rel (%p257) target = $region12
    $region11: #{focus_forward.2} parent=5 // pred_region
      %s261 = ssub.s32 %s41, 1
      // Predicated region
      $region13: #{focus_forward.2} parent=11 // pred_check
        %p262 = pneg %p198
      $region14: #{focus_forward.2} parent=11 // pred_check_branch
        %264 = sbr.rel (%p262) target = $region16
      $region15: #{focus_forward.2} parent=11 // pred_region
        _
      $region16: #{focus_forward.2} parent=11 // pred_fallthru
        _
      // Predicated region
      $region17: #{focus_forward.2} parent=11 // pred_check
        %p265 = pneg %p219
      $region18: #{focus_forward.2} parent=11 // pred_check_branch
        %267 = sbr.rel (%p265) target = $region20
      $region19: #{focus_forward.2} parent=11 // pred_region
        _
      $region20: #{focus_forward.2} parent=11 // pred_fallthru
        _
    $region12: #{focus_forward.2} parent=5 // pred_fallthru
      _
    %p268 = scmp.lt.s32.totalorder %s41, 2
    // Predicated region
    $region21: #{focus_forward.2} parent=5 // pred_check
      %p269 = pneg %p268
    $region22: #{focus_forward.2} parent=5 // pred_check_branch
      %271 = sbr.rel (%p269) target = $region24
    $region23: #{focus_forward.2} parent=5 // pred_region
      // Predicated region
      $region25: #{focus_forward.2} parent=23 // pred_check
        %p272 = pneg %p79
      $region26: #{focus_forward.2} parent=23 // pred_check_branch
        %274 = sbr.rel (%p272) target = $region28
      $region27: #{focus_forward.2} parent=23 // pred_region
        %s276 = ssub.s32 1, 0
        %s277 = smul.u32 2, %s276
        %s278 = ssub.s32 1, %s49
        %s279 = smul.u32 %s277, %s278
        %p280 = scmp.lt.s32.totalorder %s48, 1
        %s281 = scalar_select %p280, %s48, 1
        %p282 = scmp.lt.s32.totalorder 0, 0
        %s283 = scalar_select %p282, 0, 0
        %p284 = scmp.lt.s32.totalorder %s49, 0
        %s285 = scalar_select %p284, %s49, 0
        %s286 = sadd.s32 %s285, %s283
        %s287 = sadd.s32 %s286, %s281
        %s288 = smul.addr %s287, 2
        %s289 = scalar_lea.vmem %s2, %s288
        %s291 = ssub.s32 1, 0
        %s292 = smul.u32 2, %s291
        %s293 = ssub.s32 1, %s49
        %s294 = smul.u32 %s292, %s293
      $region28: #{focus_forward.2} parent=23 // pred_fallthru
        _
      // Predicated region
      $region29: #{focus_forward.2} parent=23 // pred_check
        %p295 = pneg %p111
      $region30: #{focus_forward.2} parent=23 // pred_check_branch
        %297 = sbr.rel (%p295) target = $region32
      $region31: #{focus_forward.2} parent=23 // pred_region
        %s299 = ssub.s32 1, 0
        %s300 = smul.u32 2, %s299
        %s301 = ssub.s32 1, %s49
        %s302 = smul.u32 %s300, %s301
        %p303 = scmp.lt.s32.totalorder %s48, 1
        %s304 = scalar_select %p303, %s48, 1
        %p305 = scmp.lt.s32.totalorder 0, 0
        %s306 = scalar_select %p305, 0, 0
        %p307 = scmp.lt.s32.totalorder %s49, 0
        %s308 = scalar_select %p307, %s49, 0
        %s309 = sadd.s32 %s308, %s306
        %s310 = sadd.s32 %s309, %s304
        %s311 = smul.addr %s310, 2
        %s312 = scalar_lea.vmem %s4, %s311
        %s314 = ssub.s32 1, 0
        %s315 = smul.u32 2, %s314
        %s316 = ssub.s32 1, %s49
        %s317 = smul.u32 %s315, %s316
      $region32: #{focus_forward.2} parent=23 // pred_fallthru
        _
      // Predicated region
      $region33: #{focus_forward.2} parent=23 // pred_check
        %p318 = pneg %p143
      $region34: #{focus_forward.2} parent=23 // pred_check_branch
        %320 = sbr.rel (%p318) target = $region36
      $region35: #{focus_forward.2} parent=23 // pred_region
        %s322 = ssub.s32 1, 0
        %s323 = smul.u32 2, %s322
        %s324 = ssub.s32 1, %s49
        %s325 = smul.u32 %s323, %s324
        %p326 = scmp.lt.s32.totalorder %s48, 1
        %s327 = scalar_select %p326, %s48, 1
        %p328 = scmp.lt.s32.totalorder 0, 0
        %s329 = scalar_select %p328, 0, 0
        %p330 = scmp.lt.s32.totalorder %s49, 0
        %s331 = scalar_select %p330, %s49, 0
        %s332 = sadd.s32 %s331, %s329
        %s333 = sadd.s32 %s332, %s327
        %s334 = smul.addr %s333, 2
        %s335 = scalar_lea.vmem %s5, %s334
        %s337 = ssub.s32 1, 0
        %s338 = smul.u32 2, %s337
        %s339 = ssub.s32 1, %s49
        %s340 = smul.u32 %s338, %s339
      $region36: #{focus_forward.2} parent=23 // pred_fallthru
        _
      // Predicated region
      $region37: #{focus_forward.2} parent=23 // pred_check
        %p341 = pneg %p171
      $region38: #{focus_forward.2} parent=23 // pred_check_branch
        %343 = sbr.rel (%p341) target = $region40
      $region39: #{focus_forward.2} parent=23 // pred_region
        %s344 = ssub.s32 1, %s49
        %s345 = smul.u32 2, %s344
        %p346 = scmp.lt.s32.totalorder %s48, 1
        %s347 = scalar_select %p346, %s48, 1
        %p348 = scmp.lt.s32.totalorder %s49, 0
        %s349 = scalar_select %p348, %s49, 0
        %s350 = sadd.s32 %s349, %s347
        %s351 = smul.addr %s350, 2
        %s352 = scalar_lea.vmem %s7, %s351
        %s353 = ssub.s32 1, %s49
        %s354 = smul.u32 2, %s353
      $region40: #{focus_forward.2} parent=23 // pred_fallthru
        _
    $region24: #{focus_forward.2} parent=5 // pred_fallthru
      _
    %p355 = scmp.le.s32.totalorder 1, %s41
    %p356 = scmp.lt.s32.totalorder %s41, 3
    %p357 = pnand %p355, %p356
    %p358 = pneg %p357
    // Predicated region
    $region41: #{focus_forward.2} parent=5 // pred_check
      _
    $region42: #{focus_forward.2} parent=5 // pred_check_branch
      %360 = sbr.rel (%p357) target = $region44
    $region43: #{focus_forward.2} parent=5 // pred_region
      #allocation22 [shape = 'u8[4096]{0}', space=vmem, size = 0x1000, dematerialized = true, scoped, tag = 'FusionAdapter Buffer %fusion.8 = bf16[2,16,128]{2,1,0:T(8,128)(2,1)} fusion(%param_2.39, %param_3.25, %param_4.21, %param_5.23, %param_6.20, %param_7.9, %param_8.5), kind=kLoop, calls=%fused_computation.7.clone.clone, metadata={op_name="jit(focus_forward)/concatenate" stack_frame_id=11}']
      %s361 = ssub.s32 %s41, 1
      %s363 = ssub.s32 1, 0
      %s364 = smul.u32 2, %s363
      %s365 = ssub.s32 1, %s51
      %s366 = smul.u32 %s364, %s365
      %p367 = scmp.lt.s32.totalorder %s50, 1
      %s368 = scalar_select %p367, %s50, 1
      %p369 = scmp.lt.s32.totalorder 0, 0
      %s370 = scalar_select %p369, 0, 0
      %p371 = scmp.lt.s32.totalorder %s51, 0
      %s372 = scalar_select %p371, %s51, 0
      %s373 = sadd.s32 %s372, %s370
      %s374 = sadd.s32 %s373, %s368
      %s375 = smul.addr %s374, 2
      %s376 = scalar_lea.vmem %s2, %s375
      %p377 = pneg %p85
      %p378 = pneg %p82
      %s380 = ssub.s32 1, 0
      %s381 = smul.u32 2, %s380
      %s382 = ssub.s32 1, %s51
      %s383 = smul.u32 %s381, %s382
      %p384 = scmp.lt.s32.totalorder %s50, 1
      %s385 = scalar_select %p384, %s50, 1
      %p386 = scmp.lt.s32.totalorder 0, 0
      %s387 = scalar_select %p386, 0, 0
      %p388 = scmp.lt.s32.totalorder %s51, 0
      %s389 = scalar_select %p388, %s51, 0
      %s390 = sadd.s32 %s389, %s387
      %s391 = sadd.s32 %s390, %s385
      %s392 = smul.addr %s391, 2
      %s393 = scalar_lea.vmem %s4, %s392
      %p394 = pneg %p117
      %p395 = pneg %p114
      %s397 = ssub.s32 1, 0
      %s398 = smul.u32 2, %s397
      %s399 = ssub.s32 1, %s51
      %s400 = smul.u32 %s398, %s399
      %p401 = scmp.lt.s32.totalorder %s50, 1
      %s402 = scalar_select %p401, %s50, 1
      %p403 = scmp.lt.s32.totalorder 0, 0
      %s404 = scalar_select %p403, 0, 0
      %p405 = scmp.lt.s32.totalorder %s51, 0
      %s406 = scalar_select %p405, %s51, 0
      %s407 = sadd.s32 %s406, %s404
      %s408 = sadd.s32 %s407, %s402
      %s409 = smul.addr %s408, 2
      %s410 = scalar_lea.vmem %s5, %s409
      %p411 = pneg %p149
      %p412 = pneg %p146
      %s413 = ssub.s32 1, %s51
      %s414 = smul.u32 2, %s413
      %p415 = scmp.lt.s32.totalorder %s50, 1
      %s416 = scalar_select %p415, %s50, 1
      %p417 = scmp.lt.s32.totalorder %s51, 0
      %s418 = scalar_select %p417, %s51, 0
      %s419 = sadd.s32 %s418, %s416
      %s420 = smul.addr %s419, 2
      %s421 = scalar_lea.vmem %s7, %s420
      %p422 = pneg %p177
      %p423 = pneg %p174
      %p424 = pneg %p198
      %p425 = pneg %p195
      %p426 = pneg %p219
      %p427 = pneg %p216
      %p428 = pneg %p247
      %p429 = pneg %p244
      %p430 = scmp.lt.s32.totalorder %s50, 1
      %s431 = scalar_select %p430, %s50, 1
      %p432 = scmp.lt.s32.totalorder %s51, 0
      %s433 = scalar_select %p432, %s51, 0
      %s434 = smul.addr %s431, 2
      %s435 = sadd.s32 %s433, %s434
      %s436 = smul.addr %s435, 8
      %s437 = scalar_lea.vmem %s9, %s436
      %s439 = ssub.s32 1, 0
      %s440 = smul.u32 2, %s439
      %s441 = ssub.s32 1, %s51
      %s442 = smul.u32 %s440, %s441
      %p443 = scmp.lt.s32.totalorder %s50, 1
      %s444 = scalar_select %p443, %s50, 1
      %p445 = scmp.lt.s32.totalorder 0, 0
      %s446 = scalar_select %p445, 0, 0
      %p447 = scmp.lt.s32.totalorder %s51, 0
      %s448 = scalar_select %p447, %s51, 0
      %s449 = sadd.s32 %s448, %s446
      %s450 = sadd.s32 %s449, %s444
      %s451 = smul.addr %s450, 2
      %s452 = scalar_lea.vmem %s2, %s451
      %s454 = ssub.s32 1, 0
      %s455 = smul.u32 2, %s454
      %s456 = ssub.s32 1, %s51
      %s457 = smul.u32 %s455, %s456
      %s459 = ssub.s32 1, 0
      %s460 = smul.u32 2, %s459
      %s461 = ssub.s32 1, %s51
      %s462 = smul.u32 %s460, %s461
      %p463 = scmp.lt.s32.totalorder %s50, 1
      %s464 = scalar_select %p463, %s50, 1
      %p465 = scmp.lt.s32.totalorder 0, 0
      %s466 = scalar_select %p465, 0, 0
      %p467 = scmp.lt.s32.totalorder %s51, 0
      %s468 = scalar_select %p467, %s51, 0
      %s469 = sadd.s32 %s468, %s466
      %s470 = sadd.s32 %s469, %s464
      %s471 = smul.addr %s470, 2
      %s472 = scalar_lea.vmem %s4, %s471
      %s474 = ssub.s32 1, 0
      %s475 = smul.u32 2, %s474
      %s476 = ssub.s32 1, %s51
      %s477 = smul.u32 %s475, %s476
      %s479 = ssub.s32 1, 0
      %s480 = smul.u32 2, %s479
      %s481 = ssub.s32 1, %s51
      %s482 = smul.u32 %s480, %s481
      %p483 = scmp.lt.s32.totalorder %s50, 1
      %s484 = scalar_select %p483, %s50, 1
      %p485 = scmp.lt.s32.totalorder 0, 0
      %s486 = scalar_select %p485, 0, 0
      %p487 = scmp.lt.s32.totalorder %s51, 0
      %s488 = scalar_select %p487, %s51, 0
      %s489 = sadd.s32 %s488, %s486
      %s490 = sadd.s32 %s489, %s484
      %s491 = smul.addr %s490, 2
      %s492 = scalar_lea.vmem %s5, %s491
      %s494 = ssub.s32 1, 0
      %s495 = smul.u32 2, %s494
      %s496 = ssub.s32 1, %s51
      %s497 = smul.u32 %s495, %s496
      %s498 = ssub.s32 1, %s51
      %s499 = smul.u32 2, %s498
      %p500 = scmp.lt.s32.totalorder %s50, 1
      %s501 = scalar_select %p500, %s50, 1
      %p502 = scmp.lt.s32.totalorder %s51, 0
      %s503 = scalar_select %p502, %s51, 0
      %s504 = sadd.s32 %s503, %s501
      %s505 = smul.addr %s504, 2
      %s506 = scalar_lea.vmem %s7, %s505
      %s507 = ssub.s32 1, %s51
      %s508 = smul.u32 2, %s507
      %p509 = scmp.lt.s32.totalorder %s50, 1
      %s510 = scalar_select %p509, %s50, 1
      %p511 = scmp.lt.s32.totalorder %s51, 0
      %s512 = scalar_select %p511, %s51, 0
      %s513 = smul.addr %s510, 2
      %s514 = sadd.s32 %s512, %s513
      %s515 = smul.addr %s514, 8
      %s516 = scalar_lea.vmem %s9, %s515
      %s517 = ssub.s32 0, 0
      %s518 = ssub.s32 0, %s51
      %s519 = sor.u32 %s517, %s518
      %p520 = scmp.lt.s32.totalorder %s519, 0
      %s521 = scalar_select %p520, 0, 255
      %s522 = sand.u32 15, %s521
      %s523 = sshrl.u32 %s522, 1
      %s524 = sor.u32 %s522, %s523
      %s525 = sand.u32 %s524, 5
      %s526 = sshrl.u32 %s525, 1
      %s527 = sor.u32 %s525, %s526
      %s528 = sand.u32 3, %s527
      %v529 = vld [vmem:[%s452] sm:%s528]
      %v530 = vunpack.c.l.bf16 %v529
      %v531 = vunpack.c.h.bf16 %v529
      %s532 = ssub.s32 0, %s51
      %s533 = sor.u32 4294967294, %s532
      %v534 = vstv %s533
      %vm535 = vcmp.lt.s32.totalorder %v534, 0
      %v536 = vsel %vm535, %v15, %v530
      %v537 = vlaneseq
      %v538 = vshrl.u32 %v537, 7
      %vm540 = vcmp.lt.s32.totalorder %v538, 20
      %v541 = vsel %vm540, %v536, %v15
      %s542 = smul.addr %s51, 128
      %v543 = vlaneseq
      %v544 = vand.u32 %v543, 127
      %v545 = vstv %s542
      %v546 = vadd.s32 %v544, %v545
      %vm547 = vcmp.lt.s32.totalorder %v546, 64
      %v548 = vsel %vm547, %v541, %v15
      %s549 = ssub.s32 0, %s51
      %vm550 = vcmask 1043456
      %v551 = vsel %vm550, %v15, %v548
      %v552 = vrot.slane %v551, 4
      %s553 = ssub.s32 0, 0
      %s554 = ssub.s32 0, %s51
      %s555 = sor.u32 %s553, %s554
      %p556 = scmp.lt.s32.totalorder %s555, 0
      %s557 = scalar_select %p556, 0, 255
      %s558 = sand.u32 15, %s557
      %s559 = sshrl.u32 %s558, 1
      %s560 = sor.u32 %s558, %s559
      %s561 = sand.u32 %s560, 5
      %s562 = sshrl.u32 %s561, 1
      %s563 = sor.u32 %s561, %s562
      %s564 = sand.u32 3, %s563
      %v565 = vld [vmem:[%s472] sm:%s564]
      %v566 = vunpack.c.l.bf16 %v565
      %v567 = vunpack.c.h.bf16 %v565
      %s568 = ssub.s32 0, %s51
      %s569 = ssub.s32 0, 0
      %s570 = ssub.s32 0, %s51
      %s571 = sor.u32 %s569, %s570
      %p572 = scmp.lt.s32.totalorder %s571, 0
      %s573 = scalar_select %p572, 0, 255
      %s574 = sand.u32 15, %s573
      %s575 = sshrl.u32 %s574, 1
      %s576 = sor.u32 %s574, %s575
      %s577 = sand.u32 %s576, 5
      %s578 = sshrl.u32 %s577, 1
      %s579 = sor.u32 %s577, %s578
      %s580 = sand.u32 3, %s579
      %v581 = vld [vmem:[%s492] sm:%s580]
      %v582 = vunpack.c.l.bf16 %v581
      %v583 = vunpack.c.h.bf16 %v581
      %s584 = ssub.s32 0, %s51
      %s585 = ssub.s32 0, %s51
      %v586 = vstv %s585
      %vm587 = vcmp.lt.s32.totalorder %v586, 0
      %v588 = vsel %vm587, %v25, %v582
      %v589 = vlaneseq
      %v590 = vshrl.u32 %v589, 7
      %v591 = vadd.s32 %v590, 8
      %vm592 = vcmp.lt.s32.totalorder %v591, 12
      %v593 = vsel %vm592, %v588, %v25
      %s594 = smul.addr %s51, 128
      %v595 = vlaneseq
      %v596 = vand.u32 %v595, 127
      %v597 = vstv %s594
      %v598 = vadd.s32 %v596, %v597
      %vm599 = vcmp.lt.s32.totalorder %v598, 64
      %v600 = vsel %vm599, %v593, %v25
      %vm601 = vcmask 1043456
      %v602 = vsel %vm601, %v600, %v25
      %v603 = vrot.slane %v602, 4
      %s604 = ssub.s32 0, %s51
      %p605 = scmp.lt.s32.totalorder %s604, 0
      %s606 = scalar_select %p605, 0, 255
      %s607 = sand.u32 15, %s606
      %s608 = sshrl.u32 %s607, 1
      %s609 = sor.u32 %s607, %s608
      %s610 = sand.u32 %s609, 5
      %s611 = sshrl.u32 %s610, 1
      %s612 = sor.u32 %s610, %s611
      %s613 = sand.u32 3, %s612
      %v614 = vld [vmem:[%s506] sm:%s613]
      %v615 = vunpack.c.l.bf16 %v614
      %v616 = vunpack.c.h.bf16 %v614
      %s617 = ssub.s32 0, %s51
      %v618 = vstv %s617
      %vm619 = vcmp.lt.s32.totalorder %v618, 0
      %v620 = vsel %vm619, %v31, %v615
      %v621 = vlaneseq
      %v622 = vshrl.u32 %v621, 7
      %vm624 = vcmp.lt.s32.totalorder %v622, 4
      %v625 = vsel %vm624, %v620, %v31
      %s626 = smul.addr %s51, 128
      %v627 = vlaneseq
      %v628 = vand.u32 %v627, 127
      %v629 = vstv %s626
      %v630 = vadd.s32 %v628, %v629
      %vm631 = vcmp.lt.s32.totalorder %v630, 64
      %v632 = vsel %vm631, %v625, %v31
      %s633 = smul.u32 128, %s51
      %v634 = vlaneseq
      %v635 = vand.u32 %v634, 127
      %v636 = vstv %s633
      %v637 = vadd.s32 %v635, %v636
      %639 = xla_tuple %v637, %v29
      %640 = xla_tuple %639
      %vm641 = vcmp.lt.s32.totalorder %v637, %v29
      %v642 = vsel %vm641, 1, 0
      %643 = xla_tuple %v642
      %644 = xla_tuple %v642, %v632, %v36
      %645 = xla_tuple %644
      %v646 = vsel %vm641, %v632, %v36
      %647 = xla_tuple %v646
      %648 = xla_tuple %v642, %v603, %v36
      %649 = xla_tuple %648
      %v650 = vsel %vm641, %v603, %v36
      %651 = xla_tuple %v650
      %652 = xla_tuple %v646, %v650
      %653 = xla_tuple %652
      %v654 = vmax.f32 %v646, %v650
      %655 = xla_tuple %v654
      %656 = xla_tuple %v642, %v20, %v36
      %657 = xla_tuple %656
      %v658 = vsel %vm641, %v20, %v36
      %659 = xla_tuple %v658
      %660 = xla_tuple %v654, %v658
      %661 = xla_tuple %660
      %v662 = vmax.f32 %v654, %v658
      %663 = xla_tuple %v662
      %664 = xla_tuple %v642, %v552, %v36
      %665 = xla_tuple %664
      %v666 = vsel %vm641, %v552, %v36
      %667 = xla_tuple %v666
      %668 = xla_tuple %v662, %v666
      %669 = xla_tuple %668
      %v670 = vmax.f32 %v662, %v666
      %671 = xla_tuple %v670
      %v672 = vpack.c.bf16 0.0, %v670
      %s674 = ssub.s32 16, 1
      %675 = vst [vmem:[#allocation22] sm:%s674] %v672
      %s676 = ssub.s32 0, %s51
      %v677 = vstv %s676
      %vm678 = vcmp.lt.s32.totalorder %v677, 0
      %v679 = vsel %vm678, %v15, %v530
      %v680 = vlaneseq
      %v681 = vshrl.u32 %v680, 7
      %v682 = vadd.s32 %v681, 16
      %vm683 = vcmp.lt.s32.totalorder %v682, 20
      %v684 = vsel %vm683, %v679, %v15
      %s685 = smul.addr %s51, 128
      %v686 = vlaneseq
      %v687 = vand.u32 %v686, 127
      %v688 = vstv %s685
      %v689 = vadd.s32 %v687, %v688
      %vm690 = vcmp.lt.s32.totalorder %v689, 64
      %v691 = vsel %vm690, %v684, %v15
      %vm692 = vcmask 1043456
      %v693 = vsel %vm692, %v691, %v15
      %v694 = vrot.slane %v693, 4
      %s695 = ssub.s32 0, %s51
      %v696 = vstv %s695
      %vm697 = vcmp.lt.s32.totalorder %v696, 0
      %v698 = vsel %vm697, %v20, %v566
      %v699 = vlaneseq
      %v700 = vshrl.u32 %v699, 7
      %v701 = vadd.s32 %v700, 8
      %vm702 = vcmp.lt.s32.totalorder %v701, 12
      %v703 = vsel %vm702, %v698, %v20
      %s704 = smul.addr %s51, 128
      %v705 = vlaneseq
      %v706 = vand.u32 %v705, 127
      %v707 = vstv %s704
      %v708 = vadd.s32 %v706, %v707
      %vm709 = vcmp.lt.s32.totalorder %v708, 64
      %v710 = vsel %vm709, %v703, %v20
      %s711 = ssub.s32 0, %s51
      %vm712 = vcmask 1043456
      %v713 = vsel %vm712, %v25, %v600
      %v714 = vrot.slane %v713, 4
      %s715 = smul.u32 128, %s51
      %v716 = vlaneseq
      %v717 = vand.u32 %v716, 127
      %v718 = vstv %s715
      %v719 = vadd.s32 %v717, %v718
      %721 = xla_tuple %v719, %v29
      %722 = xla_tuple %721
      %vm723 = vcmp.lt.s32.totalorder %v719, %v29
      %v724 = vsel %vm723, 1, 0
      %725 = xla_tuple %v724
      %726 = xla_tuple %v724, %v31, %v36
      %727 = xla_tuple %726
      %v728 = vsel %vm723, %v31, %v36
      %729 = xla_tuple %v728
      %730 = xla_tuple %v724, %v714, %v36
      %731 = xla_tuple %730
      %v732 = vsel %vm723, %v714, %v36
      %733 = xla_tuple %v732
      %734 = xla_tuple %v728, %v732
      %735 = xla_tuple %734
      %v736 = vmax.f32 %v728, %v732
      %737 = xla_tuple %v736
      %738 = xla_tuple %v724, %v710, %v36
      %739 = xla_tuple %738
      %v740 = vsel %vm723, %v710, %v36
      %741 = xla_tuple %v740
      %742 = xla_tuple %v736, %v740
      %743 = xla_tuple %742
      %v744 = vmax.f32 %v736, %v740
      %745 = xla_tuple %v744
      %746 = xla_tuple %v724, %v694, %v36
      %747 = xla_tuple %746
      %v748 = vsel %vm723, %v694, %v36
      %749 = xla_tuple %v748
      %750 = xla_tuple %v744, %v748
      %751 = xla_tuple %750
      %v752 = vmax.f32 %v744, %v748
      %753 = xla_tuple %v752
      %s754 = scalar_lea.vmem [#allocation22], 4
      %v755 = vpack.c.bf16 0.0, %v752
      %s757 = ssub.s32 16, 1
      %758 = vst [vmem:[%s754] sm:%s757] %v755
      %v760 = vld [vmem:[%s0] sm:$0xf]
      %v761 = vld [vmem:[%s0 + $0x4] sm:$0xf]
      %v762 = vld [vmem:[#allocation22] sm:$0xf]
      %v763 = vld [vmem:[#allocation22 + $0x4] sm:$0xf]
      %v764 = vld [vmem:[%s1] sm:$0xff]
      %v765 = vld [vmem:[%s1 + $0x8] sm:$0xff]
      %767 = vset.pattern.permute.xlu0 0
      %768 = vperm.xlu0 %767, %v764
      %v769 = vpop.permute.xlu0 %768
      %772 = vset.pattern.permute.xlu0 0
      %773 = vperm.xlu0 %772, %v765
      %v774 = vpop.permute.xlu0 %773
      %v778 = vunpack.c.l.b16 %v760
      %v779 = vunpack.c.l.b16 %v761
      %v780 = vpack.c.b16 %v779, %v778
      %v783 = vunpack.c.l.b16 %v762
      %v784 = vunpack.c.l.b16 %v763
      %v785 = vpack.c.b16 %v784, %v783
      %vm787 = vcmask 130048
      %v789 = vsel %vm787, %v780, 0
      %791 = vmatpush.bf16.msra.mxu0 0
      %792 = vmatpush.bf16.msra.mxu0 0
      %793 = vmatpush.bf16.msra.mxu0 0
      %794 = vmatpush.bf16.msra.mxu0 0
      %795 = vmatpush.bf16.msra.mxu0 0
      %796 = vmatpush.bf16.msra.mxu0 0
      %797 = vmatpush.bf16.msra.mxu0 0
      %798 = vmatpush.bf16.msra.mxu0 %v785
      %799 = vmatmul.bf16.gmra.mxu0 %v789
      %v800 = vpop.f32.mrf.mxu0
      %v801 = vadd.f32 %v769, %v800
      %v802 = vpop.f32.mrf.mxu0
      %v803 = vadd.f32 %v774, %v802
      %804 = vdwg.mxu0
      %v805 = vsub.f32 0.0, %v801
      %v806 = vsub.f32 0.0, %v803
      %v807 = vmul.f32 %v805, 1.442695
      %v808 = vpow.pop %v807
      %v809 = vmul.f32 %v806, 1.442695
      %v810 = vpow.pop %v809
      %v811 = vadd.f32 %v808, 1.0
      %v812 = vadd.f32 %v810, 1.0
      %v813 = vrcp.pop %v811
      %v814 = vrcp.pop %v812
      %v815 = vmul.f32 %v801, %v813
      %v816 = vmul.f32 %v803, %v814
      %817 = vst [vmem:[%s516] sm:$0xff] %v815
      %818 = vst [vmem:[%s516 + $0x8] sm:$0xff] %v816
      %p819 = scmp.lt.s32.totalorder %s50, 1
      %s820 = scalar_select %p819, %s50, 1
      %p821 = scmp.lt.s32.totalorder %s51, 0
      %s822 = scalar_select %p821, %s51, 0
      %s823 = smul.addr %s820, 2
      %s824 = sadd.s32 %s822, %s823
      %s825 = smul.addr %s824, 8
      %s826 = scalar_lea.vmem %s9, %s825
      // Predicated region
      $region45: #{focus_forward.2} parent=43 // pred_check
        %p827 = pneg %p244
      $region46: #{focus_forward.2} parent=43 // pred_check_branch
        %829 = sbr.rel (%p827) target = $region48
      $region47: #{focus_forward.2} parent=43 // pred_region
        _
      $region48: #{focus_forward.2} parent=43 // pred_fallthru
        _
    $region44: #{focus_forward.2} parent=5 // pred_fallthru
      _
    %p830 = scmp.le.s32.totalorder 2, %s41
    // Predicated region
    $region49: #{focus_forward.2} parent=5 // pred_check
      %p831 = pneg %p830
    $region50: #{focus_forward.2} parent=5 // pred_check_branch
      %833 = sbr.rel (%p831) target = $region52
    $region51: #{focus_forward.2} parent=5 // pred_region
      %s834 = ssub.s32 %s41, 2
      // Predicated region
      $region53: #{focus_forward.2} parent=51 // pred_check
        %p835 = pneg %p250
      $region54: #{focus_forward.2} parent=51 // pred_check_branch
        %837 = sbr.rel (%p835) target = $region56
      $region55: #{focus_forward.2} parent=51 // pred_region
        %p838 = scmp.lt.s32.totalorder %s52, 1
        %s839 = scalar_select %p838, %s52, 1
        %p840 = scmp.lt.s32.totalorder %s53, 0
        %s841 = scalar_select %p840, %s53, 0
        %s842 = smul.addr %s839, 2
        %s843 = sadd.s32 %s841, %s842
        %s844 = smul.addr %s843, 8
        %s845 = scalar_lea.vmem %s9, %s844
      $region56: #{focus_forward.2} parent=51 // pred_fallthru
        _
    $region52: #{focus_forward.2} parent=5 // pred_fallthru
      _
  $region6: #{focus_forward.2} parent=0 // loop_footer
    %s45 = sadd.s32 1, %s41
  $region7: #{focus_forward.2} parent=0 // loop_footer_branch
    %40 = sbr.rel target = $region3
  $region8: #{focus_forward.2} parent=0 // loop_exit
    _

</llo_original>
